<compile_context>
chip_gen: v5e
topology: v5e:2x2
jax: 0.10.0
libtpu: 0.0.40
codegen_flags: <defaults>
</compile_context>

<pallas_src>
import jax
import jax.numpy as jnp
from jax import lax
from jax.experimental import pallas as pl
from jax.experimental.pallas import tpu as pltpu

_EPS = 1e-5


# --------------------------------------------------------------------------- #
# Generation-aware VMEM budgeting
# --------------------------------------------------------------------------- #
def _vmem_budgets():
    """Returns (vmem_limit_bytes, per-x-block byte budget) for this chip generation."""
    try:
        cap = int(pltpu.get_tpu_info().vmem_capacity_bytes)
    except Exception:
        cap = 64 * 1024 * 1024            # conservative fallback (v7x per-core VMEM)
    vmem_limit = min((cap * 3) // 4, 96 * 1024 * 1024)   # 48 MiB on v7x, 96 MiB on v5e/v6e
    x_block_budget = min(vmem_limit // 6, 8 * 1024 * 1024)
    return vmem_limit, x_block_budget


# --------------------------------------------------------------------------- #
# Fast path: whole problem fits comfortably in VMEM -> single grid-less call.
# --------------------------------------------------------------------------- #
def _cbn_fused_kernel(x_ref, y_ref, w_ref, o_ref):
    x = x_ref[...].astype(jnp.float32)                      # (N, C, L)
    n, c, l = x.shape
    count = n * l

    # BatchNorm1d training stats, two-pass (mean, then centered variance).
    mean = jnp.sum(x, axis=(0, 2), keepdims=True) * (1.0 / count)   # (1, C, 1)
    d = x - mean
    var = jnp.sum(d * d, axis=(0, 2), keepdims=True) * (1.0 / count)
    inv_std = lax.rsqrt(var + _EPS)                                 # (1, C, 1)

    # Fused 1x1 conv: one (N, K) @ (K, 2C) dot; gamma = cols [:C], beta = cols [C:].
    gb = jnp.dot(y_ref[...].astype(jnp.float32), w_ref[...].astype(jnp.float32),
                 preferred_element_type=jnp.float32)        # (N, 2C)
    # Pre-combine per-(n, c) scale/bias so the big array sees a single multiply-add.
    scale = inv_std * (gb[:, :c, None] + 1.0)               # (N, C, 1)
    bias = gb[:, c:, None] - mean * scale                   # (N, C, 1)
    o_ref[...] = (x * scale + bias).astype(o_ref.dtype)


def _cbn_fused(x, y, w_k2c, vmem_limit):
    n, c, l = x.shape
    vmem = pl.BlockSpec(memory_space=pltpu.MemorySpace.VMEM)
    return pl.pallas_call(
        _cbn_fused_kernel,
        out_shape=jax.ShapeDtypeStruct((n, c, l), x.dtype),
        in_specs=[vmem, vmem, vmem],
        out_specs=vmem,
        compiler_params=pltpu.CompilerParams(vmem_limit_bytes=vmem_limit),
    )(x, y, w_k2c)


# --------------------------------------------------------------------------- #
# Tiled path: pass 1 = per-tile partial stats, merge in wrapper, pass 2 = apply.
# --------------------------------------------------------------------------- #
def _stats_kernel(x_ref, part_ref):
    # Per-tile partials only (no cross-step state) -> both grid axes can be "parallel".
    x = x_ref[...].astype(jnp.float32)                      # (tn, C, tl)
    nb = x.shape[0] * x.shape[2]
    lmean = jnp.sum(x, axis=(0, 2), keepdims=True) * (1.0 / nb)   # (1, C, 1)
    d = x - lmean
    m2 = jnp.sum(d * d, axis=(0, 2), keepdims=True)               # (1, C, 1) centered SSQ
    part_ref[0] = lmean[0]                                        # (C, 1)
    part_ref[1] = m2[0]                                           # (C, 1)


def _apply_kernel(x_ref, a_ref, b_ref, o_ref):
    # Pure streaming: out = x * scale + bias (scale/bias broadcast over L).
    x = x_ref[...].astype(jnp.float32)                      # (tn, C, tl)
    o_ref[...] = (x * a_ref[...] + b_ref[...]).astype(o_ref.dtype)


def _pick_tiles(n, c, l, x_block_budget, vmem_limit):
    """Pick (tn, tl) jointly against the byte budget; always returns a legal tiling."""
    c_pad = ((c + 7) // 8) * 8
    # Lane-dense tl candidates: multiples of 128 that divide L, plus the full extent.
    tl_cands = [t for t in range(128, l + 1, 128) if l % t == 0]
    if l not in tl_cands:
        tl_cands.append(l)                                  # full extent is always legal
    tn_cands = [d for d in range(1, n + 1) if n % d == 0]

    best = None
    for tl in tl_cands:
        for tn in tn_cands:
            x_blk = tn * c * tl * 4                          # f32 x block
            sb_blk = tn * c_pad * 128 * 4                    # (tn, C, 1) lane-padded f32
            step_bytes = 4 * x_blk + 4 * sb_blk              # in+out and scale/bias, x2 buffered
            if x_blk <= x_block_budget and step_bytes <= vmem_limit:
                key = (x_blk, tl, tn)                        # biggest block, then lane-dense
                if best is None or key > best[0]:
                    best = (key, (tn, tl))
    if best is not None:
        return best[1]
    # Guaranteed fallback: smallest legal block (only hit for extreme C*L; the explicit
    # vmem_limit gives the compiler the best remaining chance).
    return 1, min(tl_cands)


def _cbn_tiled(x, y, w_k2c, vmem_limit, x_block_budget):
    n, c, l = x.shape
    tn, tl = _pick_tiles(n, c, l, x_block_budget, vmem_limit)
    nn, nl = n // tn, l // tl

    # Pass 1: independent per-tile (mean, M2) partials; both axes megacore-shardable.
    parts = pl.pallas_call(
        _stats_kernel,
        out_shape=jax.ShapeDtypeStruct((nn, nl, 2, c, 1), jnp.float32),
        grid=(nn, nl),
        in_specs=[pl.BlockSpec((tn, c, tl), lambda i, j: (i, 0, j))],
        out_specs=pl.BlockSpec((None, None, 2, c, 1), lambda i, j: (i, j, 0, 0, 0)),
        compiler_params=pltpu.CompilerParams(
            dimension_semantics=("parallel", "parallel"),
            vmem_limit_bytes=vmem_limit),
    )(x)

    # Exact equal-count Chan merge of the tiny (T, C) partials in plain XLA.
    tile_means = parts[:, :, 0, :, 0].reshape(-1, c)         # (T, C)
    tile_m2 = parts[:, :, 1, :, 0].reshape(-1, c)            # (T, C)
    nb = float(tn * tl)
    mean = jnp.mean(tile_means, axis=0)                      # (C,)
    ss = jnp.sum(tile_m2, axis=0) + nb * jnp.sum((tile_means - mean) ** 2, axis=0)
    inv_std = lax.rsqrt(ss / float(n * l) + _EPS)            # (C,)

    # Hoisted gamma/beta (K~8 matmul is negligible) folded with the stats into
    # per-(n, c) scale' = inv_std*(1+gamma), bias' = beta - mean*scale'.
    gb = jnp.dot(y.astype(jnp.float32), w_k2c.astype(jnp.float32),
                 preferred_element_type=jnp.float32)         # (N, 2C)
    scale = inv_std[None, :] * (gb[:, :c] + 1.0)             # (N, C)
    bias = gb[:, c:] - mean[None, :] * scale                 # (N, C)
    scale3 = scale[:, :, None].astype(jnp.float32)           # (N, C, 1)
    bias3 = bias[:, :, None].astype(jnp.float32)             # (N, C, 1)

    # Pass 2: single streaming multiply-add; both axes "parallel".
    return pl.pallas_call(
        _apply_kernel,
        out_shape=jax.ShapeDtypeStruct((n, c, l), x.dtype),
        grid=(nn, nl),
        in_specs=[
            pl.BlockSpec((tn, c, tl), lambda i, j: (i, 0, j)),
            pl.BlockSpec((tn, c, 1), lambda i, j: (i, 0, 0)),
            pl.BlockSpec((tn, c, 1), lambda i, j: (i, 0, 0)),
        ],
        out_specs=pl.BlockSpec((tn, c, tl), lambda i, j: (i, 0, j)),
        compiler_params=pltpu.CompilerParams(
            dimension_semantics=("parallel", "parallel"),
            vmem_limit_bytes=vmem_limit),
    )(x, scale3, bias3)


# --------------------------------------------------------------------------- #
# Public wrapper
# --------------------------------------------------------------------------- #
def conditional_batch_norm(x, y, w_embed, *, tiled=None, x_block_budget=None):
    """CBN forward. x: (N, C, L), y: (N, K), w_embed: (2C, K, 1) conv1x1 weight."""
    n, c, l = x.shape
    k = y.shape[1]
    assert w_embed.shape == (2 * c, k, 1)
    # Free layout plumbing in the wrapper: drop the kernel-size-1 dim and pre-transpose
    # so the embed matmul is a single y @ W (gamma = cols [:C], beta = cols [C:],
    # matching torch.chunk(2, dim=1) ordering).
    w_k2c = jnp.transpose(w_embed[:, :, 0])                  # (K, 2C)

    vmem_limit, default_budget = _vmem_budgets()
    if x_block_budget is None:
        x_block_budget = default_budget
    if tiled is None:
        # Fast-path threshold sized on the f32 in-kernel working set (~5x x_f32 in VMEM).
        f32_bytes = n * c * l * 4
        tiled = f32_bytes > vmem_limit // 8
    if tiled:
        return _cbn_tiled(x, y, w_k2c, vmem_limit, x_block_budget)
    return _cbn_fused(x, y, w_k2c, vmem_limit)


# --------------------------------------------------------------------------- #
# Reference + self-test
# --------------------------------------------------------------------------- #
def _reference(x, y, w_embed):
    mean = jnp.mean(x, axis=(0, 2), keepdims=True)
    var = jnp.mean((x - mean) ** 2, axis=(0, 2), keepdims=True)
    out = (x - mean) / jnp.sqrt(var + _EPS)
    embed = jnp.einsum("nk,okz->noz", y, w_embed)            # (N, 2C, 1)
    c = x.shape[1]
    gamma, beta = embed[:, :c], embed[:, c:]
    return out + gamma * out + beta


if __name__ == "__main__":
    keys = jax.random.split(jax.random.PRNGKey(0), 9)

    def _run_case(n, c, l, k, kx, ky, kw, *, tiled=None, x_block_budget=None):
        x = jax.random.normal(kx, (n, c, l), dtype=jnp.float32)
        y = jax.random.normal(ky, (n, k), dtype=jnp.float32)
        # kaiming_normal_(a=1) on Conv1d(K, 2C, 1): std = 1/sqrt(fan_in) = 1/sqrt(K)
        w_embed = jax.random.normal(kw, (2 * c, k, 1), dtype=jnp.float32) / jnp.sqrt(1.0 * k)
        out = jax.block_until_ready(
            conditional_batch_norm(x, y, w_embed, tiled=tiled,
                                   x_block_budget=x_block_budget))
        ref = _reference(x, y, w_embed)
        assert out.shape == (n, c, l)
        assert jnp.allclose(out, ref, atol=1e-4, rtol=1e-4), \
            f"mismatch vs reference for shape {(n, c, l, k)}"

    # tiny spec-sized case (C=4 features, K=8 classes): grid-less fused fast path
    _run_case(2, 4, 16, 8, keys[0], keys[1], keys[2])
    # lane-dense tiled two-pass path; small block budget forces a multi-step grid,
    # exercising the per-tile partial-stats merge and parallel/parallel axes
    _run_case(4, 8, 2048, 6, keys[3], keys[4], keys[5],
              tiled=True, x_block_budget=64 * 1024)
    # tiled path with the default generation-aware block budget
    _run_case(2, 16, 1024, 8, keys[6], keys[7], keys[8], tiled=True)

    print("KERNEL_OK")
</pallas_src>

<mosaic_0001>
module attributes {stable_mosaic.version = 11 : i64} {
  func.func @_cbn_fused_kernel(%arg0: memref<2x4x16xf32, #tpu.memory_space<vmem>>, %arg1: memref<2x8xf32, #tpu.memory_space<vmem>>, %arg2: memref<8x8xf32, #tpu.memory_space<vmem>>, %arg3: memref<2x4x16xf32, #tpu.memory_space<vmem>>) attributes {dimension_semantics = [], scalar_prefetch = 0 : i64, scratch_operands = 0 : i64, tpu.core_type = #tpu.core_type<tc>} {
    %c0 = arith.constant 0 : index
    %c0_0 = arith.constant 0 : index
    %c0_1 = arith.constant 0 : index
    %0 = vector.load %arg0[%c0, %c0_0, %c0_1] : memref<2x4x16xf32, #tpu.memory_space<vmem>>, vector<2x4x16xf32>
    %cst = arith.constant dense<0.000000e+00> : vector<4xf32>
    %1 = vector.multi_reduction <add>, %0, %cst [0, 2] : vector<2x4x16xf32> to vector<4xf32>
    %2 = vector.shape_cast %1 : vector<4xf32> to vector<1x4x1xf32>
    %cst_2 = arith.constant 3.125000e-02 : f32
    %3 = vector.broadcast %cst_2 : f32 to vector<1x4x1xf32>
    %4 = arith.mulf %2, %3 : vector<1x4x1xf32>
    %5 = vector.broadcast %4 : vector<1x4x1xf32> to vector<2x4x16xf32>
    %6 = arith.subf %0, %5 : vector<2x4x16xf32>
    %7 = arith.mulf %6, %6 : vector<2x4x16xf32>
    %cst_3 = arith.constant dense<0.000000e+00> : vector<4xf32>
    %8 = vector.multi_reduction <add>, %7, %cst_3 [0, 2] : vector<2x4x16xf32> to vector<4xf32>
    %9 = vector.shape_cast %8 : vector<4xf32> to vector<1x4x1xf32>
    %cst_4 = arith.constant 3.125000e-02 : f32
    %10 = vector.broadcast %cst_4 : f32 to vector<1x4x1xf32>
    %11 = arith.mulf %9, %10 : vector<1x4x1xf32>
    %cst_5 = arith.constant 9.99999974E-6 : f32
    %12 = vector.broadcast %cst_5 : f32 to vector<1x4x1xf32>
    %13 = arith.addf %11, %12 : vector<1x4x1xf32>
    %14 = math.rsqrt %13 : vector<1x4x1xf32>
    %c0_6 = arith.constant 0 : index
    %c0_7 = arith.constant 0 : index
    %15 = vector.load %arg1[%c0_6, %c0_7] : memref<2x8xf32, #tpu.memory_space<vmem>>, vector<2x8xf32>
    %c0_8 = arith.constant 0 : index
    %c0_9 = arith.constant 0 : index
    %16 = vector.load %arg2[%c0_8, %c0_9] : memref<8x8xf32, #tpu.memory_space<vmem>>, vector<8x8xf32>
    %cst_10 = arith.constant dense<0.000000e+00> : vector<2x8xf32>
    %17 = tpu.matmul %15, %16, %cst_10 {dimension_numbers = #tpu.dot_dimension_numbers<[1], [0], [0], [1], [0, 0, 1, 1], [], []>} : vector<2x8xf32>, vector<8x8xf32>, vector<2x8xf32> -> vector<2x8xf32>
    %18 = vector.extract_strided_slice %17 {offsets = [0, 0], sizes = [2, 4], strides = [1, 1]} : vector<2x8xf32> to vector<2x4xf32>
    %19 = vector.shape_cast %18 : vector<2x4xf32> to vector<2x4x1xf32>
    %cst_11 = arith.constant 1.000000e+00 : f32
    %20 = vector.broadcast %cst_11 : f32 to vector<2x4x1xf32>
    %21 = arith.addf %19, %20 : vector<2x4x1xf32>
    %22 = vector.broadcast %14 : vector<1x4x1xf32> to vector<2x4x1xf32>
    %23 = arith.mulf %22, %21 : vector<2x4x1xf32>
    %24 = vector.extract_strided_slice %17 {offsets = [0, 4], sizes = [2, 4], strides = [1, 1]} : vector<2x8xf32> to vector<2x4xf32>
    %25 = vector.shape_cast %24 : vector<2x4xf32> to vector<2x4x1xf32>
    %26 = vector.broadcast %4 : vector<1x4x1xf32> to vector<2x4x1xf32>
    %27 = arith.mulf %26, %23 : vector<2x4x1xf32>
    %28 = arith.subf %25, %27 : vector<2x4x1xf32>
    %29 = vector.broadcast %23 : vector<2x4x1xf32> to vector<2x4x16xf32>
    %30 = arith.mulf %0, %29 : vector<2x4x16xf32>
    %31 = vector.broadcast %28 : vector<2x4x1xf32> to vector<2x4x16xf32>
    %32 = arith.addf %30, %31 : vector<2x4x16xf32>
    %c0_12 = arith.constant 0 : index
    %c0_13 = arith.constant 0 : index
    %c0_14 = arith.constant 0 : index
    %33 = vector.load %arg3[%c0_12, %c0_13, %c0_14] : memref<2x4x16xf32, #tpu.memory_space<vmem>>, vector<2x4x16xf32>
    tpu.vector_store %arg3[%c0_12, %c0_13, %c0_14], %32 {strides = array<i32>} : memref<2x4x16xf32, #tpu.memory_space<vmem>>, vector<2x4x16xf32>,
    return
  }
}

</mosaic_0001>

<llo_original>
// kernel: tpu_custom_call.1
$region0: #{tpu_custom_call.1}
  #allocation0 [shape = 'u32[]', space=smem, size = 0x4, offset = 0x4, fixed_abs, tag = 'smem constant byte address 0x4 - core index']
  #allocation1 [shape = 'u32[72,128]{1,0:T(1,128)}', space=vmem, size = 0x9000, scoped, tag = 'internal scratch']
  %s0 = inlined_call_operand.hbm [shape: f32[2,4,16], index: 0, kind: input, shape index: {}]
  %s1 = inlined_call_operand.hbm [shape: f32[2,8], index: 1, kind: input, shape index: {}]
  %s2 = inlined_call_operand.hbm [shape: f32[8,8], index: 2, kind: input, shape index: {}]
  %s3 = inlined_call_operand.hbm [shape: f32[2,4,16], index: 3, kind: output, shape index: {}]
  %s4 = sld [smem:[#allocation0]]
  $region34: #{tpu_custom_call.1} parent=0
    _
  %s6 = ssub.s32 1, %s4
  %s7 = scalar_select 0, %s6, %s4
  $region1: #{tpu_custom_call.1} parent=0
    #allocation2 [shape = 'u8[4096]{0}', space=vmem, size = 0x1000, scoped, tag = 'input window, operand 0, single buffered']
    #allocation3 [shape = 's32[1]{0}', space=sflag, size = 0x4, scoped, tag = 'scoped memory for tpu_custom_call.1']
    #allocation4 [shape = 's32[1]{0}', space=sflag, size = 0x4, scoped, tag = 'scoped memory for tpu_custom_call.1']
    #allocation5 [shape = 'u8[1024]{0}', space=vmem, size = 0x400, scoped, tag = 'input window, operand 1, single buffered']
    #allocation6 [shape = 's32[1]{0}', space=sflag, size = 0x4, scoped, tag = 'scoped memory for tpu_custom_call.1']
    #allocation7 [shape = 'u8[4096]{0}', space=vmem, size = 0x1000, scoped, tag = 'input window, operand 2, single buffered']
    #allocation8 [shape = 'u8[4096]{0}', space=vmem, size = 0x1000, scoped, tag = 'output window, operand 0, single buffered']
    %8 = vsyncpa [#allocation3], 0
    %9 = vsyncpa [#allocation6], 0
    %10 = vsyncpa [#allocation4], 0
    // Predicated region
    $region2: #{tpu_custom_call.1} parent=1 // pred_check
      _
    $region3: #{tpu_custom_call.1} parent=1 // pred_check_branch
      %12 = sbr.rel (0) target = $region5
    $region4: #{tpu_custom_call.1} parent=1 // pred_region
      %14 = vsyncadd [#allocation3], 0
      %s15 = sshll.u32 %s0, 4
      %s16 = int_to_ptr.hbm [resolvable:$true] %s15
      %s17 = sshll.u32 [#allocation2], 4
      %s18 = int_to_ptr.vmem [resolvable:$true] %s17
      %23 = dma.hbm_to_vmem [thread:$0]  %s16, 128, %s18, [#allocation3], 64, 64, 4
    $region5: #{tpu_custom_call.1} parent=1 // pred_fallthru
      _
    // Predicated region
    $region6: #{tpu_custom_call.1} parent=1 // pred_check
      _
    $region7: #{tpu_custom_call.1} parent=1 // pred_check_branch
      %25 = sbr.rel (0) target = $region9
    $region8: #{tpu_custom_call.1} parent=1 // pred_region
      %27 = vsyncadd [#allocation6], 0
      %s29 = sshll.u32 %s1, 4
      %s30 = int_to_ptr.hbm [resolvable:$true] %s29
      %s31 = sshll.u32 [#allocation5], 4
      %s32 = int_to_ptr.vmem [resolvable:$true] %s31
      %34 = dma.hbm_to_vmem [thread:$0]  %s30, 32, %s32, [#allocation6]
    $region9: #{tpu_custom_call.1} parent=1 // pred_fallthru
      _
    // Predicated region
    $region10: #{tpu_custom_call.1} parent=1 // pred_check
      _
    $region11: #{tpu_custom_call.1} parent=1 // pred_check_branch
      %36 = sbr.rel (0) target = $region13
    $region12: #{tpu_custom_call.1} parent=1 // pred_region
      %38 = vsyncadd [#allocation6], 0
      %s40 = sshll.u32 %s2, 4
      %s41 = int_to_ptr.hbm [resolvable:$true] %s40
      %s42 = sshll.u32 [#allocation7], 4
      %s43 = int_to_ptr.vmem [resolvable:$true] %s42
      %45 = dma.hbm_to_vmem [thread:$0]  %s41, 128, %s43, [#allocation6]
    $region13: #{tpu_custom_call.1} parent=1 // pred_fallthru
      _
    // Predicated region
    $region14: #{tpu_custom_call.1} parent=1 // pred_check
      _
    $region15: #{tpu_custom_call.1} parent=1 // pred_check_branch
      %47 = sbr.rel (0) target = $region17
    $region16: #{tpu_custom_call.1} parent=1 // pred_region
      %49 = dma.done [#allocation3], 128
    $region17: #{tpu_custom_call.1} parent=1 // pred_fallthru
      _
    // Predicated region
    $region18: #{tpu_custom_call.1} parent=1 // pred_check
      _
    $region19: #{tpu_custom_call.1} parent=1 // pred_check_branch
      %51 = sbr.rel (0) target = $region21
    $region20: #{tpu_custom_call.1} parent=1 // pred_region
      %53 = dma.done [#allocation6], 32
    $region21: #{tpu_custom_call.1} parent=1 // pred_fallthru
      _
    // Predicated region
    $region22: #{tpu_custom_call.1} parent=1 // pred_check
      _
    $region23: #{tpu_custom_call.1} parent=1 // pred_check_branch
      %55 = sbr.rel (0) target = $region25
    $region24: #{tpu_custom_call.1} parent=1 // pred_region
      %57 = dma.done [#allocation6], 128
    $region25: #{tpu_custom_call.1} parent=1 // pred_fallthru
      _
    %v58 = vld [vmem:[#allocation2] sm:$0xf]
    %v59 = vld [vmem:[#allocation2 + $0x4] sm:$0xf]
    %vm60 = vcmask 125952
    %v61 = vsel %vm60, %v58, 0.0
    %v62 = vsel %vm60, %v59, 0.0
    %v63 = vadd.f32 %v61, %v62
    %64 = vadd.xlane.f32.xlu0 %v63
    %v65 = vpop.xlane.xlu0 %64
    %v66 = vmul.f32 %v65, 0.03125
    %v67 = vsub.f32 %v58, %v66
    %v68 = vsub.f32 %v59, %v66
    %v69 = vmul.f32 %v67, %v67
    %v70 = vmul.f32 %v68, %v68
    %v71 = vsel %vm60, %v69, 0.0
    %v72 = vsel %vm60, %v70, 0.0
    %v73 = vadd.f32 %v71, %v72
    %74 = vadd.xlane.f32.xlu0 %v73
    %v75 = vpop.xlane.xlu0 %74
    %v76 = vmul.f32 %v75, 0.03125
    %v77 = vadd.f32 %v76, 1e-05
    %v78 = vrsqrt.pop %v77
    %v79 = vmul.f32 %v78, %v77
    %v80 = vmul.f32 %v79, %v78
    %v81 = vmul.f32 0.5, %v80
    %v82 = vsub.f32 1.5, %v81
    %v83 = vmul.f32 %v78, %v82
    %vm84 = vweird.f32 %v77
    %vm85 = vweird.f32 %v78
    %vm86 = vmor %vm84, %vm85
    %v87 = vsel %vm86, %v78, %v83
    %v88 = vld [vmem:[#allocation5] sm:$0x3]
    %v89 = vld [vmem:[#allocation7] sm:$0xff]
    %vm90 = vcmask 64512
    %v92 = vsel %vm90, %v88, 0
    %94 = vmatpush.msra.mxu0 0.0
    %95 = vmatpush.msra.mxu0 0.0
    %96 = vmatpush.msra.mxu0 0.0
    %97 = vmatpush.msra.mxu0 0.0
    %98 = vmatpush.msra.mxu0 0.0
    %99 = vmatpush.msra.mxu0 0.0
    %100 = vmatpush.msra.mxu0 0.0
    %101 = vmatpush.msra.mxu0 0.0
    %102 = vmatpush.msra.mxu0 0.0
    %103 = vmatpush.msra.mxu0 0.0
    %104 = vmatpush.msra.mxu0 0.0
    %105 = vmatpush.msra.mxu0 0.0
    %106 = vmatpush.msra.mxu0 0.0
    %107 = vmatpush.msra.mxu0 0.0
    %108 = vmatpush.msra.mxu0 0.0
    %109 = vmatpush.msra.mxu0 %v89
    %110 = vmatmul.f32.gmra.mxu0 %v92
    %v111 = vpop.f32.mrf.mxu0
    %v112 = vadd.f32 0.0, %v111
    %113 = vdwg.mxu0
    %v114 = vperm.slane %v112, 0
    %v115 = vlaneseq
    %v116 = vshrl.u32 %v115, 7
    %118 = vset.pattern.permute.xlu0 %v116
    %119 = vperm.xlu0 %118, %v114
    %v120 = vpop.permute.xlu0 %119
    %v121 = vperm.slane %v112, 1
    %v122 = vlaneseq
    %v123 = vshrl.u32 %v122, 7
    %125 = vset.pattern.permute.xlu0 %v123
    %126 = vperm.xlu0 %125, %v121
    %v127 = vpop.permute.xlu0 %126
    %v128 = vadd.f32 %v120, 1.0
    %v129 = vadd.f32 %v127, 1.0
    %v130 = vmul.f32 %v87, %v128
    %v131 = vmul.f32 %v87, %v129
    %v132 = vlaneseq
    %v133 = vshrl.u32 %v132, 7
    %v134 = vadd.s32 %v133, 4
    %135 = vset.pattern.permute.xlu0 %v134
    %136 = vperm.xlu0 %135, %v114
    %v137 = vpop.permute.xlu0 %136
    %v138 = vlaneseq
    %v139 = vshrl.u32 %v138, 7
    %v140 = vadd.s32 %v139, 4
    %141 = vset.pattern.permute.xlu0 %v140
    %142 = vperm.xlu0 %141, %v121
    %v143 = vpop.permute.xlu0 %142
    %v144 = vmul.f32 %v66, %v130
    %v145 = vmul.f32 %v66, %v131
    %v146 = vsub.f32 %v137, %v144
    %v147 = vsub.f32 %v143, %v145
    %v148 = vmul.f32 %v58, %v130
    %v149 = vmul.f32 %v59, %v131
    %v150 = vadd.f32 %v148, %v146
    %v151 = vadd.f32 %v149, %v147
    %152 = vst.msk [vmem:[#allocation8] sm:$0xf] %vm60, %v150
    %153 = vst.msk [vmem:[#allocation8 + $0x4] sm:$0xf] %vm60, %v151
    // Predicated region
    $region26: #{tpu_custom_call.1} parent=1 // pred_check
      _
    $region27: #{tpu_custom_call.1} parent=1 // pred_check_branch
      %155 = sbr.rel (0) target = $region29
    $region28: #{tpu_custom_call.1} parent=1 // pred_region
      %157 = vsyncadd [#allocation4], 0
      %s158 = sshll.u32 [#allocation8], 4
      %s159 = int_to_ptr.vmem [resolvable:$true] %s158
      %s160 = sshll.u32 %s3, 4
      %s161 = int_to_ptr.hbm [resolvable:$true] %s160
      %166 = dma.vmem_to_hbm [thread:$0]  %s159, 128, %s161, [#allocation4], 64, 64, 4
    $region29: #{tpu_custom_call.1} parent=1 // pred_fallthru
      _
    // Predicated region
    $region30: #{tpu_custom_call.1} parent=1 // pred_check
      _
    $region31: #{tpu_custom_call.1} parent=1 // pred_check_branch
      %168 = sbr.rel (0) target = $region33
    $region32: #{tpu_custom_call.1} parent=1 // pred_region
      %170 = dma.done [#allocation4], 128
    $region33: #{tpu_custom_call.1} parent=1 // pred_fallthru
      _
    %171 = vsyncpa [#allocation3], 1
    %172 = vsyncpa [#allocation6], 1
    %173 = vsyncpa [#allocation4], 1

</llo_original>
